<compile_context>
chip_gen: v7x
topology: tpu7x:2x2x1
jax: 0.10.0
libtpu: 0.0.40
codegen_flags: <defaults>
</compile_context>

<pallas_src>
import functools

import jax
import jax.numpy as jnp
from jax.experimental import pallas as pl
from jax.experimental.pallas import tpu as pltpu

_LANE = 128
_SUBLANE = 16  # covers bf16 sublane packing; also valid for f32


def _round_up(x, m):
    return ((x + m - 1) // m) * m


def _vmem_capacity_bytes():
    try:
        return int(pltpu.get_tpu_info().vmem_capacity_bytes)
    except Exception:
        return 64 * 1024 * 1024  # conservative fallback (v7x per-core VMEM)


def _pick_tile_n(M, Kp, Dp, x_bytes, out_bytes, w_bytes, tile_n, budget):
    """Largest TN (multiple of _SUBLANE, <= tile_n) whose working set fits."""
    tn = max(_SUBLANE,
             _round_up(min(tile_n, _round_up(M, _SUBLANE)), _SUBLANE))
    while tn > _SUBLANE:
        need = (2 * tn * Kp * x_bytes        # double-buffered patch tile
                + 2 * tn * Dp * out_bytes    # double-buffered output tile
                + Kp * Dp * w_bytes          # single-buffered resident weight
                + Dp * 4)                    # bias (f32)
        if need <= budget:
            break
        tn -= _SUBLANE
    return tn


def _patch_embed_kernel(x_ref, w_ref, b_ref, o_ref):
    # x_ref: (TN, Kp) patch rows     w_ref: (Kp, Dp) VMEM-resident weight
    # b_ref: (1, Dp) f32 bias        o_ref: (TN, Dp) output tile
    acc = jnp.dot(x_ref[...], w_ref[...], preferred_element_type=jnp.float32)
    o_ref[...] = (acc + b_ref[...]).astype(o_ref.dtype)


def dino2_patch_embeddings(pixel_values, weight, bias, patch_size,
                           compute_dtype=jnp.bfloat16, out_dtype=None,
                           tile_n=1024):
    """pixel_values: (B, C, H, W) NCHW (PyTorch convention).
    weight: (dim, C, p, p) PyTorch Conv2d weight layout.
    bias:   (dim,).
    compute_dtype: MXU operand dtype (default bf16); accumulation is f32.
    out_dtype: output dtype (default: weight.dtype).
    Returns (B, N_patches, dim)."""
    B, C, H, W = pixel_values.shape
    dim = weight.shape[0]
    p = patch_size
    nh, nw = H // p, W // p
    N = nh * nw
    K = C * p * p
    M = B * N
    if out_dtype is None:
        out_dtype = weight.dtype

    # Lane-align contraction (K) and output (D) dims to 128.
    Kp = _round_up(K, _LANE)
    Dp = _round_up(dim, _LANE)

    x_bytes = jnp.dtype(compute_dtype).itemsize
    out_bytes = jnp.dtype(out_dtype).itemsize

    # VMEM budget: raise the scoped default explicitly, keep headroom so a
    # v6e-tuned tile still fits v7x's 64 MiB.
    vmem_cap = _vmem_capacity_bytes()
    vmem_limit = max(32 * 2**20, min(vmem_cap - 8 * 2**20, 112 * 2**20))
    TN = _pick_tile_n(M, Kp, Dp, x_bytes, out_bytes, x_bytes, tile_n,
                      budget=int(0.75 * vmem_limit))
    Mp = _round_up(M, TN)

    # im2col: cast FIRST (halves the bytes of this extra HBM pass), then
    # (B, C, H, W) -> (B*N, K) with K flattened in (C, kh, kw) order to match
    # the Conv2d weight layout; zero-pad rows to Mp and lanes to Kp.
    x = pixel_values[:, :, :nh * p, :nw * p].astype(compute_dtype)
    x = x.reshape(B, C, nh, p, nw, p)
    x = jnp.transpose(x, (0, 2, 4, 1, 3, 5)).reshape(M, K)
    x = jnp.pad(x, ((0, Mp - M), (0, Kp - K)))

    # Conv weight (dim, C, p, p) -> (Kp, Dp) zero-padded; bias -> (1, Dp) f32.
    w = weight.reshape(dim, K).astype(compute_dtype)
    w = jnp.pad(w, ((0, Dp - dim), (0, Kp - K))).T
    b = jnp.pad(bias.astype(jnp.float32), (0, Dp - dim)).reshape(1, Dp)

    grid = (Mp // TN,)
    out = pl.pallas_call(
        _patch_embed_kernel,
        out_shape=jax.ShapeDtypeStruct((Mp, Dp), out_dtype),
        grid_spec=pltpu.PrefetchScalarGridSpec(
            num_scalar_prefetch=0,
            grid=grid,
            in_specs=[
                # patch-row tile
                pl.BlockSpec((TN, Kp), lambda i: (i, 0)),
                # weight: constant block index + single buffer -> fetched once
                pl.BlockSpec((Kp, Dp), lambda i: (0, 0),
                             pipeline_mode=pl.Buffered(1)),
                # bias: constant block index + single buffer
                pl.BlockSpec((1, Dp), lambda i: (0, 0),
                             pipeline_mode=pl.Buffered(1)),
            ],
            out_specs=pl.BlockSpec((TN, Dp), lambda i: (i, 0)),
        ),
        compiler_params=pltpu.CompilerParams(
            dimension_semantics=("parallel",),
            vmem_limit_bytes=int(vmem_limit)),
    )(x, w, b)

    # Drop row / lane zero-padding (no-ops when M % TN == 0 and dim % 128 == 0,
    # e.g. DINOv2 dims 768/1024/1536) and restore (B, N, dim).
    return out[:M, :dim].reshape(B, N, dim)


if __name__ == "__main__":
    # Small shapes consistent with the module: batch=2, channels=4,
    # image_size=16, patch_size=4, dim=32  ->  N = (16/4)^2 = 16 patches.
    B, C, H, W = 2, 4, 16, 16
    patch_size = 4
    dim = 32

    key = jax.random.PRNGKey(0)
    k_x, k_w, k_b = jax.random.split(key, 3)
    pixel_values = jax.random.normal(k_x, (B, C, H, W), dtype=jnp.float32)
    weight = jax.random.normal(k_w, (dim, C, patch_size, patch_size),
                               dtype=jnp.float32) * 0.02
    bias = jax.random.normal(k_b, (dim,), dtype=jnp.float32) * 0.02

    # Default perf path: bf16 MXU operands, f32 accumulation, out = weight dtype.
    fwd = jax.jit(functools.partial(dino2_patch_embeddings,
                                    patch_size=patch_size))
    out = jax.block_until_ready(fwd(pixel_values, weight, bias))

    # Full-f32 path (matches the PyTorch module's default numerics).
    fwd_f32 = jax.jit(functools.partial(dino2_patch_embeddings,
                                        patch_size=patch_size,
                                        compute_dtype=jnp.float32))
    out_f32 = jax.block_until_ready(fwd_f32(pixel_values, weight, bias))

    # Reference: strided conv via lax, then flatten(2).transpose(1, 2).
    ref_conv = jax.lax.conv_general_dilated(
        pixel_values, weight,
        window_strides=(patch_size, patch_size), padding="VALID",
        dimension_numbers=("NCHW", "OIHW", "NCHW"))
    ref_conv = ref_conv + bias.reshape(1, dim, 1, 1)
    ref = jnp.transpose(ref_conv.reshape(B, dim, -1), (0, 2, 1))

    N = (H // patch_size) * (W // patch_size)
    assert out.shape == (B, N, dim)
    assert out_f32.shape == (B, N, dim)
    assert jnp.allclose(out_f32, ref, atol=1e-4, rtol=1e-4)
    assert jnp.allclose(out, ref, atol=5e-2, rtol=5e-2)
    print("KERNEL_OK")
</pallas_src>

<mosaic_0001>
module attributes {stable_mosaic.version = 11 : i64} {
  func.func @_patch_embed_kernel(%arg0: i32, %arg1: memref<32x128xbf16, #tpu.memory_space<vmem>>, %arg2: memref<128x128xbf16, #tpu.memory_space<vmem>>, %arg3: memref<1x128xf32, #tpu.memory_space<vmem>>, %arg4: memref<32x128xf32, #tpu.memory_space<vmem>>) attributes {dimension_semantics = [#tpu.dimension_semantics<parallel>], iteration_bounds = array<i64: 1>, scalar_prefetch = 0 : i64, scratch_operands = 0 : i64, tpu.core_type = #tpu.core_type<tc>, window_params = [{transform_indices = @transform_0, window_bounds = array<i64: 32, 128>}, {pipeline_mode = #tpu.pipeline_mode<synchronous>, transform_indices = @transform_1, window_bounds = array<i64: 128, 128>}, {pipeline_mode = #tpu.pipeline_mode<synchronous>, transform_indices = @transform_2, window_bounds = array<i64: 1, 128>}, {transform_indices = @transform_3, window_bounds = array<i64: 32, 128>}]} {
    %c0 = arith.constant 0 : index
    %c0_0 = arith.constant 0 : index
    %0 = vector.load %arg1[%c0, %c0_0] : memref<32x128xbf16, #tpu.memory_space<vmem>>, vector<32x128xbf16>
    %c0_1 = arith.constant 0 : index
    %c0_2 = arith.constant 0 : index
    %1 = vector.load %arg2[%c0_1, %c0_2] : memref<128x128xbf16, #tpu.memory_space<vmem>>, vector<128x128xbf16>
    %cst = arith.constant dense<0.000000e+00> : vector<32x128xf32>
    %2 = tpu.matmul %0, %1, %cst {dimension_numbers = #tpu.dot_dimension_numbers<[1], [0], [0], [1], [0, 0, 1, 1], [], []>} : vector<32x128xbf16>, vector<128x128xbf16>, vector<32x128xf32> -> vector<32x128xf32>
    %c0_3 = arith.constant 0 : index
    %c0_4 = arith.constant 0 : index
    %3 = vector.load %arg3[%c0_3, %c0_4] : memref<1x128xf32, #tpu.memory_space<vmem>>, vector<1x128xf32>
    %4 = vector.broadcast %3 : vector<1x128xf32> to vector<32x128xf32>
    %5 = arith.addf %2, %4 : vector<32x128xf32>
    %c0_5 = arith.constant 0 : index
    %c0_6 = arith.constant 0 : index
    %6 = vector.load %arg4[%c0_5, %c0_6] : memref<32x128xf32, #tpu.memory_space<vmem>>, vector<32x128xf32>
    tpu.vector_store %arg4[%c0_5, %c0_6], %5 {strides = array<i32>} : memref<32x128xf32, #tpu.memory_space<vmem>>, vector<32x128xf32>,
    return
  }
  func.func @transform_0(%arg0: i32) -> (i32, i32) {
    %c0_i32 = arith.constant 0 : i32
    %c0_i32_0 = arith.constant 0 : i32
    return %arg0, %c0_i32 : i32, i32
  }
  func.func @transform_1(%arg0: i32) -> (i32, i32) {
    %c0_i32 = arith.constant 0 : i32
    %c0_i32_0 = arith.constant 0 : i32
    %c0_i32_1 = arith.constant 0 : i32
    return %c0_i32, %c0_i32_0 : i32, i32
  }
  func.func @transform_2(%arg0: i32) -> (i32, i32) {
    %c0_i32 = arith.constant 0 : i32
    %c0_i32_0 = arith.constant 0 : i32
    %c0_i32_1 = arith.constant 0 : i32
    return %c0_i32, %c0_i32_0 : i32, i32
  }
  func.func @transform_3(%arg0: i32) -> (i32, i32) {
    %c0_i32 = arith.constant 0 : i32
    %c0_i32_0 = arith.constant 0 : i32
    return %arg0, %c0_i32 : i32, i32
  }
}

</mosaic_0001>

<llo_original>
// kernel: dino2_patch_embeddings.1
$region0: #{dino2_patch_embeddings.1}
  #allocation0 [shape = 'u32[]', space=smem, size = 0x4, offset = 0x4, fixed_abs, tag = 'smem constant byte address 0x4 - core index']
  #allocation1 [shape = 'u32[144,128]{1,0:T(1,128)}', space=vmem, size = 0x12000, scoped, tag = 'internal scratch']
  %s0 = inlined_call_operand.vmem [shape: bf16[32,128], index: 0, kind: input, shape index: {}]
  %s1 = inlined_call_operand.vmem [shape: bf16[128,128], index: 1, kind: input, shape index: {}]
  %s2 = inlined_call_operand.vmem [shape: f32[1,128], index: 2, kind: input, shape index: {}]
  %s3 = inlined_call_operand.hbm [shape: f32[32,128], index: 3, kind: output, shape index: {}]
  %s4 = sld [smem:[#allocation0]]
  $region22: #{dino2_patch_embeddings.1} parent=0
    _
  %s6 = ssub.s32 1, %s4
  %s7 = scalar_select 0, %s6, %s4
  $region1: #{dino2_patch_embeddings.1} parent=0
    #allocation2 [shape = 'u8[16384]{0}', space=vmem, size = 0x4000, scoped, tag = 'output window, operand 0, single buffered']
    #allocation3 [shape = 's32[1]{0}', space=sflag, size = 0x4, scoped, tag = 'scoped memory for dino2_patch_embeddings.1']
    %8 = vsyncpa [#allocation3], 0
    // Predicated region
    $region2: #{dino2_patch_embeddings.1} parent=1 // pred_check
      _
    $region3: #{dino2_patch_embeddings.1} parent=1 // pred_check_branch
      %10 = sbr.rel (0) target = $region5
    $region4: #{dino2_patch_embeddings.1} parent=1 // pred_region
      _
    $region5: #{dino2_patch_embeddings.1} parent=1 // pred_fallthru
      _
    // Predicated region
    $region6: #{dino2_patch_embeddings.1} parent=1 // pred_check
      _
    $region7: #{dino2_patch_embeddings.1} parent=1 // pred_check_branch
      %12 = sbr.rel (0) target = $region9
    $region8: #{dino2_patch_embeddings.1} parent=1 // pred_region
      _
    $region9: #{dino2_patch_embeddings.1} parent=1 // pred_fallthru
      _
    // Predicated region
    $region10: #{dino2_patch_embeddings.1} parent=1 // pred_check
      _
    $region11: #{dino2_patch_embeddings.1} parent=1 // pred_check_branch
      %14 = sbr.rel (0) target = $region13
    $region12: #{dino2_patch_embeddings.1} parent=1 // pred_region
      _
    $region13: #{dino2_patch_embeddings.1} parent=1 // pred_fallthru
      _
    %v16 = vld [vmem:[%s0] sm:$0xf]
    %v17 = vld [vmem:[%s0 + $0x4] sm:$0xf]
    %v18 = vld [vmem:[%s0 + $0x8] sm:$0xf]
    %v19 = vld [vmem:[%s0 + $0xc] sm:$0xf]
    %v20 = vld [vmem:[%s1] sm:$0xf]
    %v21 = vld [vmem:[%s1 + $0x4] sm:$0xf]
    %v22 = vld [vmem:[%s1 + $0x8] sm:$0xf]
    %v23 = vld [vmem:[%s1 + $0xc] sm:$0xf]
    %v24 = vld [vmem:[%s1 + $0x10] sm:$0xf]
    %v25 = vld [vmem:[%s1 + $0x14] sm:$0xf]
    %v26 = vld [vmem:[%s1 + $0x18] sm:$0xf]
    %v27 = vld [vmem:[%s1 + $0x1c] sm:$0xf]
    %v28 = vld [vmem:[%s1 + $0x20] sm:$0xf]
    %v29 = vld [vmem:[%s1 + $0x24] sm:$0xf]
    %v30 = vld [vmem:[%s1 + $0x28] sm:$0xf]
    %v31 = vld [vmem:[%s1 + $0x2c] sm:$0xf]
    %v32 = vld [vmem:[%s1 + $0x30] sm:$0xf]
    %v33 = vld [vmem:[%s1 + $0x34] sm:$0xf]
    %v34 = vld [vmem:[%s1 + $0x38] sm:$0xf]
    %v35 = vld [vmem:[%s1 + $0x3c] sm:$0xf]
    %v36 = vld [vmem:[%s2] sm:$0x1]
    %v38 = vlaneseq
    %v39 = vshrl.u32 %v38, 7
    %v40 = vsub.s32 0, %v39
    %v41 = vrot.slane %v36, %v40
    %v47 = vunpack.c.l.b16 %v16
    %v48 = vunpack.c.l.b16 %v17
    %v49 = vunpack.c.l.b16 %v18
    %v50 = vunpack.c.l.b16 %v19
    %v51 = vpack.c.b16 %v48, %v47
    %v52 = vpack.c.b16 %v50, %v49
    %v71 = vunpack.c.l.b16 %v20
    %v72 = vunpack.c.l.b16 %v21
    %v73 = vunpack.c.l.b16 %v22
    %v74 = vunpack.c.l.b16 %v23
    %v75 = vunpack.c.l.b16 %v24
    %v76 = vunpack.c.l.b16 %v25
    %v77 = vunpack.c.l.b16 %v26
    %v78 = vunpack.c.l.b16 %v27
    %v79 = vunpack.c.l.b16 %v28
    %v80 = vunpack.c.l.b16 %v29
    %v81 = vunpack.c.l.b16 %v30
    %v82 = vunpack.c.l.b16 %v31
    %v83 = vunpack.c.l.b16 %v32
    %v84 = vunpack.c.l.b16 %v33
    %v85 = vunpack.c.l.b16 %v34
    %v86 = vunpack.c.l.b16 %v35
    %v87 = vpack.c.b16 %v72, %v71
    %v88 = vpack.c.b16 %v74, %v73
    %v89 = vpack.c.b16 %v76, %v75
    %v90 = vpack.c.b16 %v78, %v77
    %v91 = vpack.c.b16 %v80, %v79
    %v92 = vpack.c.b16 %v82, %v81
    %v93 = vpack.c.b16 %v84, %v83
    %v94 = vpack.c.b16 %v86, %v85
    %103 = vmatprep.subr.bf16.mxu0 0
    %104 = vmatpush1.bf16.msra.mxu0 %v87
    %105 = vmatprep.subr.bf16.mxu0 0
    %106 = vmatpush1.bf16.msra.mxu0 %v88
    %107 = vmatprep.subr.bf16.mxu0 0
    %108 = vmatpush1.bf16.msra.mxu0 %v89
    %109 = vmatprep.subr.bf16.mxu0 0
    %110 = vmatpush1.bf16.msra.mxu0 %v90
    %111 = vmatprep.subr.bf16.mxu0 0
    %112 = vmatpush1.bf16.msra.mxu0 %v91
    %113 = vmatprep.subr.bf16.mxu0 0
    %114 = vmatpush1.bf16.msra.mxu0 %v92
    %115 = vmatprep.subr.bf16.mxu0 0
    %116 = vmatpush1.bf16.msra.mxu0 %v93
    %117 = vmatprep.subr.bf16.mxu0 0
    %118 = vmatpush1.bf16.msra.mxu0 %v94
    %119 = vmatprep.subr.bf16.mxu0 0
    %120 = vmatpush1.bf16.msra.mxu0 0
    %121 = vmatprep.subr.bf16.mxu0 0
    %122 = vmatpush1.bf16.msra.mxu0 0
    %123 = vmatprep.subr.bf16.mxu0 0
    %124 = vmatpush1.bf16.msra.mxu0 0
    %125 = vmatprep.subr.bf16.mxu0 0
    %126 = vmatpush1.bf16.msra.mxu0 0
    %127 = vmatprep.subr.bf16.mxu0 0
    %128 = vmatpush1.bf16.msra.mxu0 0
    %129 = vmatprep.subr.bf16.mxu0 0
    %130 = vmatpush1.bf16.msra.mxu0 0
    %131 = vmatprep.subr.bf16.mxu0 0
    %132 = vmatpush1.bf16.msra.mxu0 0
    %133 = vmatprep.subr.bf16.mxu0 0
    %134 = vmatpush1.bf16.msra.mxu0 0
    %135 = vmatprep.mubr.bf16.mxu0 0
    %136 = vmatmul.mubr.bf16.gmra.mrb[0].mxu0 %v51
    %v137 = vpop.f32.mrb[0].mxu0
    %v138 = vadd.f32 %v41, %v137
    %v139 = vpop.f32.mrb[0].mxu0
    %v140 = vpop.f32.mrb[0].mxu0
    %v141 = vadd.f32 %v41, %v140
    %v142 = vpop.f32.mrb[0].mxu0
    %143 = vmatprep.mubr.bf16.mxu0 0
    %144 = vmatmul.mubr.bf16.gmra.mrb[0].mxu0 %v52
    %v145 = vpop.f32.mrb[0].mxu0
    %v146 = vadd.f32 %v41, %v145
    %v147 = vpop.f32.mrb[0].mxu0
    %v148 = vpop.f32.mrb[0].mxu0
    %v149 = vadd.f32 %v41, %v148
    %v150 = vpop.f32.mrb[0].mxu0
    %151 = vdwg.mxu0
    %152 = vst [vmem:[#allocation2] sm:$0xff] %v138
    %153 = vst [vmem:[#allocation2 + $0x8] sm:$0xff] %v141
    %154 = vst [vmem:[#allocation2 + $0x10] sm:$0xff] %v146
    %155 = vst [vmem:[#allocation2 + $0x18] sm:$0xff] %v149
    // Predicated region
    $region14: #{dino2_patch_embeddings.1} parent=1 // pred_check
      _
    $region15: #{dino2_patch_embeddings.1} parent=1 // pred_check_branch
      %157 = sbr.rel (0) target = $region17
    $region16: #{dino2_patch_embeddings.1} parent=1 // pred_region
      %s159 = ssub.s32 512, 512
      %160 = vsyncadd [#allocation3], %s159
      %s161 = sshll.u32 [#allocation2], 4
      %s162 = int_to_ptr.vmem [resolvable:$true] %s161
      %167 = dma.vmem_to_hbm [thread:$0]  %s162, 512, %s3, [#allocation3], 128, 128, 8
    $region17: #{dino2_patch_embeddings.1} parent=1 // pred_fallthru
      _
    // Predicated region
    $region18: #{dino2_patch_embeddings.1} parent=1 // pred_check
      _
    $region19: #{dino2_patch_embeddings.1} parent=1 // pred_check_branch
      %169 = sbr.rel (0) target = $region21
    $region20: #{dino2_patch_embeddings.1} parent=1 // pred_region
      %170 = dma.done [#allocation3], 512
    $region21: #{dino2_patch_embeddings.1} parent=1 // pred_fallthru
      _
    %171 = vsyncpa [#allocation3], 1

</llo_original>
